<compile_context>
chip_gen: v7x
topology: tpu7x:2x2x1
jax: 0.10.0
libtpu: 0.0.40
codegen_flags: <defaults>
</compile_context>

<pallas_src>
import functools

import jax
import jax.numpy as jnp
from jax import lax
from jax.experimental import pallas as pl
from jax.experimental.pallas import tpu as pltpu

_LANES = 128
_SUBLANES = 8
_MAX_TILE_BYTES = 4 * 1024 * 1024    # 4 MiB per input block
_GOOD_TILE_BYTES = 512 * 1024        # accept a no-pad divisor tile >= 512 KiB


def _round_up(x, m):
    return (x + m - 1) // m * m


def _choose_tiling(n, min_tile, max_tile, good_tile):
    """Pick (T, S, N_pad) with T a multiple of min_tile, T <= max_tile.

    Prefers T | n (no padding, free reshape).  Falls back to a minimal
    zero-pad only when n has no usable divisor (rare for image shapes).
    """
    if n % min_tile == 0:
        m = n // min_tile
        cap = max(1, max_tile // min_tile)
        d = min(cap, m)
        while d >= 1:
            if m % d == 0:
                break
            d -= 1
        t = d * min_tile
        if t == n or t >= good_tile:
            return t, n // t, n
    # Fallback: pad (copies inputs; only for awkward N).  Padding gt with 0.0
    # is excluded by the mask, so it contributes neither sum nor count.
    s = max(1, -(-n // max_tile))                 # cdiv(n, max_tile)
    t = _round_up(-(-n // s), min_tile)           # cdiv(n, s) rounded up
    return t, s, s * t


def _pick_parallel_split(batch, s_tiles):
    """Spatial parallel split so both v7x TensorCores get work at small/odd B."""
    if s_tiles <= 1 or batch % 2 == 0:
        return 1
    for p in (2, 3, 5, 7):
        if s_tiles % p == 0:
            return p
    return s_tiles if batch == 1 else 1


def _l1_loss_kernel(gt_ref, pred_ref, dsum_ref, nval_ref, *,
                    maxdisp, t_valid, ch):
    s = pl.program_id(2)

    # Output blocks are resident across the (last, "arbitrary") s axis and act
    # as the accumulators; zero them on the first spatial tile of each (b, p).
    @pl.when(s == 0)
    def _():
        dsum_ref[...] = jnp.zeros_like(dsum_ref)
        nval_ref[...] = jnp.zeros_like(nval_ref)

    r = gt_ref.shape[2]
    n_chunks = r // ch                      # static; T is a multiple of ch*128

    def body(i, carry):
        dsum, nval = carry
        start = pl.multiple_of(i * ch, ch)
        g = gt_ref[0, 0, pl.ds(start, ch), :].astype(jnp.float32)
        p = pred_ref[0, 0, pl.ds(start, ch), :].astype(jnp.float32)
        # gt only needs the upper clamp: values <= t_valid (incl. negatives)
        # are excluded by the mask, so min() matches the reference clip.
        g = jnp.minimum(g, maxdisp)
        p = jnp.clip(p, 0.0, maxdisp)
        m = (g > t_valid).astype(jnp.float32)
        d = jnp.abs(p - g) * m
        if ch != _SUBLANES:                 # fold packed sublane groups (bf16)
            d = jnp.sum(d.reshape(ch // _SUBLANES, _SUBLANES, _LANES), axis=0)
            m = jnp.sum(m.reshape(ch // _SUBLANES, _SUBLANES, _LANES), axis=0)
        return dsum + d, nval + m

    init = (jnp.zeros((_SUBLANES, _LANES), jnp.float32),
            jnp.zeros((_SUBLANES, _LANES), jnp.float32))
    dsum, nval = lax.fori_loop(0, n_chunks, body, init,
                               unroll=min(8, n_chunks))

    dsum_ref[...] += dsum.reshape(dsum_ref.shape)
    nval_ref[...] += nval.reshape(nval_ref.shape)


def l1_loss(gt, pred, *, maxdisp=192.0, t_valid=0.0001):
    """Pallas TPU implementation of L1Loss.forward(gt, pred) -> scalar."""
    assert gt.shape == pred.shape and gt.ndim == 3
    B, H, W = gt.shape
    N = H * W

    itemsize = jnp.dtype(gt.dtype).itemsize
    pack = max(1, 4 // itemsize)                 # sublane packing (bf16 -> 2)
    min_tile = _SUBLANES * _LANES * pack
    max_tile = _MAX_TILE_BYTES // itemsize
    good_tile = _GOOD_TILE_BYTES // itemsize
    ch = _SUBLANES * pack

    T, S, N_pad = _choose_tiling(N, min_tile, max_tile, good_tile)
    R = T // _LANES

    gt_flat = gt.reshape(B, N)
    pred_flat = pred.reshape(B, N)
    if N_pad != N:
        # Rare fallback only (awkward N); padded gt=0 is masked out.
        padw = ((0, 0), (0, N_pad - N))
        gt_flat = jnp.pad(gt_flat, padw)
        pred_flat = jnp.pad(pred_flat, padw)
    gt4 = gt_flat.reshape(B, S, R, _LANES)
    pred4 = pred_flat.reshape(B, S, R, _LANES)

    P = _pick_parallel_split(B, S)
    S_pp = S // P

    kernel = functools.partial(_l1_loss_kernel, maxdisp=float(maxdisp),
                               t_valid=float(t_valid), ch=ch)

    out_block = pl.BlockSpec((1, 1, _SUBLANES, _LANES),
                             lambda b, p, s: (b, p, 0, 0))
    in_block = pl.BlockSpec((1, 1, R, _LANES),
                            lambda b, p, s: (b, p * S_pp + s, 0, 0))

    dsum, nval = pl.pallas_call(
        kernel,
        out_shape=(
            jax.ShapeDtypeStruct((B, P, _SUBLANES, _LANES), jnp.float32),
            jax.ShapeDtypeStruct((B, P, _SUBLANES, _LANES), jnp.float32),
        ),
        grid_spec=pltpu.PrefetchScalarGridSpec(
            num_scalar_prefetch=0,
            grid=(B, P, S_pp),
            in_specs=[in_block, in_block],
            out_specs=[out_block, out_block],
        ),
        compiler_params=pltpu.CompilerParams(
            # batch and spatial-split axes are independent (megacore-shardable
            # on v7x); the innermost spatial axis is the per-(b,p) reduction
            # into the resident output blocks and must stay "arbitrary".
            dimension_semantics=("parallel", "parallel", "arbitrary"),
            # 2 inputs x 2 pipeline buffers x up-to-4MiB blocks + slack;
            # needed because v5e's default scoped VMEM is only 16 MiB.
            vmem_limit_bytes=32 * 1024 * 1024,
        ),
    )(gt4, pred4)

    d_b = jnp.sum(dsum, axis=(1, 2, 3))          # (B,)  sum |pred-gt|*mask
    n_b = jnp.sum(nval, axis=(1, 2, 3))          # (B,)  valid count
    return jnp.sum(d_b / (n_b + 1e-8))


def _l1_loss_ref(gt, pred, *, maxdisp=192.0, t_valid=0.0001):
    gt = jnp.clip(gt, 0.0, maxdisp)
    pred = jnp.clip(pred, 0.0, maxdisp)
    mask = (gt > t_valid).astype(pred.dtype)
    d = jnp.abs(pred - gt) * mask
    d = jnp.sum(d, axis=(1, 2))
    num_valid = jnp.sum(mask, axis=(1, 2))
    return jnp.sum(d / (num_valid + 1e-8))


if __name__ == "__main__":
    key = jax.random.PRNGKey(0)
    k1, k2 = jax.random.split(key)

    B, H, W = 2, 16, 16
    MAXDISP = 192.0  # deterministic synthetic "args.maxdisp"

    # gt has some invalid (<= t_valid) pixels, values in [-1, maxdisp+20]
    gt = jax.random.uniform(k1, (B, H, W), jnp.float32, minval=-1.0,
                            maxval=MAXDISP + 20.0)
    pred = jax.random.uniform(k2, (B, H, W), jnp.float32, minval=-1.0,
                              maxval=MAXDISP + 20.0)

    loss = l1_loss(gt, pred, maxdisp=MAXDISP)
    jax.block_until_ready(loss)

    ref = _l1_loss_ref(gt, pred, maxdisp=MAXDISP)
    assert jnp.allclose(loss, ref, rtol=1e-4, atol=1e-4), (loss, ref)

    print("KERNEL_OK")
</pallas_src>

<mosaic_0001>
module attributes {stable_mosaic.version = 11 : i64} {
  func.func @_l1_loss_kernel(%arg0: i32, %arg1: i32, %arg2: i32, %arg3: memref<1x1x8x128xf32, #tpu.memory_space<vmem>>, %arg4: memref<1x1x8x128xf32, #tpu.memory_space<vmem>>, %arg5: memref<1x1x8x128xf32, #tpu.memory_space<vmem>>, %arg6: memref<1x1x8x128xf32, #tpu.memory_space<vmem>>) attributes {dimension_semantics = [#tpu.dimension_semantics<parallel>, #tpu.dimension_semantics<parallel>, #tpu.dimension_semantics<arbitrary>], iteration_bounds = array<i64: 2, 1, 1>, scalar_prefetch = 0 : i64, scratch_operands = 0 : i64, tpu.core_type = #tpu.core_type<tc>, window_params = [{transform_indices = @transform_0, window_bounds = array<i64: 1, 1, 8, 128>}, {transform_indices = @transform_1, window_bounds = array<i64: 1, 1, 8, 128>}, {transform_indices = @transform_2, window_bounds = array<i64: 1, 1, 8, 128>}, {transform_indices = @transform_3, window_bounds = array<i64: 1, 1, 8, 128>}]} {
    %c0_i32 = arith.constant 0 : i32
    %0 = arith.cmpi eq, %arg2, %c0_i32 : i32
    %1 = arith.extui %0 : i1 to i32
    %c0_i32_0 = arith.constant 0 : i32
    %2 = arith.cmpi ne, %1, %c0_i32_0 : i32
    scf.if %2 {
      %cst_28 = arith.constant 0.000000e+00 : f32
      %36 = vector.broadcast %cst_28 : f32 to vector<1x1x8x128xf32>
      %c0_29 = arith.constant 0 : index
      %c0_30 = arith.constant 0 : index
      %c0_31 = arith.constant 0 : index
      %c0_32 = arith.constant 0 : index
      %37 = vector.load %arg5[%c0_29, %c0_30, %c0_31, %c0_32] : memref<1x1x8x128xf32, #tpu.memory_space<vmem>>, vector<1x1x8x128xf32>
      tpu.vector_store %arg5[%c0_29, %c0_30, %c0_31, %c0_32], %36 {strides = array<i32>} : memref<1x1x8x128xf32, #tpu.memory_space<vmem>>, vector<1x1x8x128xf32>,
      %cst_33 = arith.constant 0.000000e+00 : f32
      %38 = vector.broadcast %cst_33 : f32 to vector<1x1x8x128xf32>
      %c0_34 = arith.constant 0 : index
      %c0_35 = arith.constant 0 : index
      %c0_36 = arith.constant 0 : index
      %c0_37 = arith.constant 0 : index
      %39 = vector.load %arg6[%c0_34, %c0_35, %c0_36, %c0_37] : memref<1x1x8x128xf32, #tpu.memory_space<vmem>>, vector<1x1x8x128xf32>
      tpu.vector_store %arg6[%c0_34, %c0_35, %c0_36, %c0_37], %38 {strides = array<i32>} : memref<1x1x8x128xf32, #tpu.memory_space<vmem>>, vector<1x1x8x128xf32>,
    } else {
    }
    %cst = arith.constant 0.000000e+00 : f32
    %3 = vector.broadcast %cst : f32 to vector<8x128xf32>
    %cst_1 = arith.constant 0.000000e+00 : f32
    %4 = vector.broadcast %cst_1 : f32 to vector<8x128xf32>
    %c0_i32_2 = arith.constant 0 : i32
    %c8_i32 = arith.constant 8 : i32
    %5 = arith.muli %c0_i32_2, %c8_i32 : i32
    %6 = tpu.assume_multiple %5, 8 : i32
    %c0 = arith.constant 0 : index
    %c0_3 = arith.constant 0 : index
    %7 = arith.index_cast %6 : i32 to index
    %c0_4 = arith.constant 0 : index
    %8 = vector.load %arg3[%c0, %c0_3, %7, %c0_4] : memref<1x1x8x128xf32, #tpu.memory_space<vmem>>, vector<1x1x8x128xf32>
    %9 = vector.shape_cast %8 : vector<1x1x8x128xf32> to vector<8x128xf32>
    %c0_5 = arith.constant 0 : index
    %c0_6 = arith.constant 0 : index
    %10 = arith.index_cast %6 : i32 to index
    %c0_7 = arith.constant 0 : index
    %11 = vector.load %arg4[%c0_5, %c0_6, %10, %c0_7] : memref<1x1x8x128xf32, #tpu.memory_space<vmem>>, vector<1x1x8x128xf32>
    %12 = vector.shape_cast %11 : vector<1x1x8x128xf32> to vector<8x128xf32>
    %cst_8 = arith.constant 1.920000e+02 : f32
    %13 = vector.broadcast %cst_8 : f32 to vector<8x128xf32>
    %14 = arith.minimumf %9, %13 : vector<8x128xf32>
    %cst_9 = arith.constant 0.000000e+00 : f32
    %cst_10 = arith.constant 1.920000e+02 : f32
    %15 = vector.broadcast %cst_9 : f32 to vector<8x128xf32>
    %16 = arith.maximumf %15, %12 : vector<8x128xf32>
    %17 = vector.broadcast %cst_10 : f32 to vector<8x128xf32>
    %18 = arith.minimumf %17, %16 : vector<8x128xf32>
    %cst_11 = arith.constant 9.99999974E-5 : f32
    %19 = vector.broadcast %cst_11 : f32 to vector<8x128xf32>
    %20 = arith.cmpf ogt, %14, %19 : vector<8x128xf32>
    %21 = arith.extui %20 : vector<8x128xi1> to vector<8x128xi32>
    %22 = arith.sitofp %21 : vector<8x128xi32> to vector<8x128xf32>
    %23 = arith.subf %18, %14 : vector<8x128xf32>
    %24 = math.absf %23 : vector<8x128xf32>
    %25 = arith.mulf %24, %22 : vector<8x128xf32>
    %26 = arith.addf %3, %25 : vector<8x128xf32>
    %27 = arith.addf %4, %22 : vector<8x128xf32>
    %c1_i32 = arith.constant 1 : i32
    %c0_12 = arith.constant 0 : index
    %c0_13 = arith.constant 0 : index
    %c0_14 = arith.constant 0 : index
    %c0_15 = arith.constant 0 : index
    %28 = vector.load %arg5[%c0_12, %c0_13, %c0_14, %c0_15] : memref<1x1x8x128xf32, #tpu.memory_space<vmem>>, vector<1x1x8x128xf32>
    %29 = vector.shape_cast %26 : vector<8x128xf32> to vector<1x1x8x128xf32>
    %30 = arith.addf %28, %29 : vector<1x1x8x128xf32>
    %c0_16 = arith.constant 0 : index
    %c0_17 = arith.constant 0 : index
    %c0_18 = arith.constant 0 : index
    %c0_19 = arith.constant 0 : index
    %31 = vector.load %arg5[%c0_16, %c0_17, %c0_18, %c0_19] : memref<1x1x8x128xf32, #tpu.memory_space<vmem>>, vector<1x1x8x128xf32>
    tpu.vector_store %arg5[%c0_16, %c0_17, %c0_18, %c0_19], %30 {strides = array<i32>} : memref<1x1x8x128xf32, #tpu.memory_space<vmem>>, vector<1x1x8x128xf32>,
    %c0_20 = arith.constant 0 : index
    %c0_21 = arith.constant 0 : index
    %c0_22 = arith.constant 0 : index
    %c0_23 = arith.constant 0 : index
    %32 = vector.load %arg6[%c0_20, %c0_21, %c0_22, %c0_23] : memref<1x1x8x128xf32, #tpu.memory_space<vmem>>, vector<1x1x8x128xf32>
    %33 = vector.shape_cast %27 : vector<8x128xf32> to vector<1x1x8x128xf32>
    %34 = arith.addf %32, %33 : vector<1x1x8x128xf32>
    %c0_24 = arith.constant 0 : index
    %c0_25 = arith.constant 0 : index
    %c0_26 = arith.constant 0 : index
    %c0_27 = arith.constant 0 : index
    %35 = vector.load %arg6[%c0_24, %c0_25, %c0_26, %c0_27] : memref<1x1x8x128xf32, #tpu.memory_space<vmem>>, vector<1x1x8x128xf32>
    tpu.vector_store %arg6[%c0_24, %c0_25, %c0_26, %c0_27], %34 {strides = array<i32>} : memref<1x1x8x128xf32, #tpu.memory_space<vmem>>, vector<1x1x8x128xf32>,
    return
  }
  func.func @transform_0(%arg0: i32, %arg1: i32, %arg2: i32) -> (i32, i32, i32, i32) {
    %c1_i32 = arith.constant 1 : i32
    %0 = arith.muli %arg1, %c1_i32 : i32
    %1 = arith.addi %0, %arg2 : i32
    %c0_i32 = arith.constant 0 : i32
    %c0_i32_0 = arith.constant 0 : i32
    %c0_i32_1 = arith.constant 0 : i32
    return %arg0, %1, %c0_i32, %c0_i32_0 : i32, i32, i32, i32
  }
  func.func @transform_1(%arg0: i32, %arg1: i32, %arg2: i32) -> (i32, i32, i32, i32) {
    %c1_i32 = arith.constant 1 : i32
    %0 = arith.muli %arg1, %c1_i32 : i32
    %1 = arith.addi %0, %arg2 : i32
    %c0_i32 = arith.constant 0 : i32
    %c0_i32_0 = arith.constant 0 : i32
    %c0_i32_1 = arith.constant 0 : i32
    return %arg0, %1, %c0_i32, %c0_i32_0 : i32, i32, i32, i32
  }
  func.func @transform_2(%arg0: i32, %arg1: i32, %arg2: i32) -> (i32, i32, i32, i32) {
    %c0_i32 = arith.constant 0 : i32
    %c0_i32_0 = arith.constant 0 : i32
    %c0_i32_1 = arith.constant 0 : i32
    return %arg0, %arg1, %c0_i32, %c0_i32_0 : i32, i32, i32, i32
  }
  func.func @transform_3(%arg0: i32, %arg1: i32, %arg2: i32) -> (i32, i32, i32, i32) {
    %c0_i32 = arith.constant 0 : i32
    %c0_i32_0 = arith.constant 0 : i32
    %c0_i32_1 = arith.constant 0 : i32
    return %arg0, %arg1, %c0_i32, %c0_i32_0 : i32, i32, i32, i32
  }
}

</mosaic_0001>

<llo_original>
// kernel: tpu_custom_call.1
$region0: #{tpu_custom_call.1}
  #allocation0 [shape = 'u32[]', space=smem, size = 0x4, offset = 0x4, fixed_abs, tag = 'smem constant byte address 0x4 - core index']
  #allocation1 [shape = 'u32[144,128]{1,0:T(1,128)}', space=vmem, size = 0x12000, scoped, tag = 'internal scratch']
  %s0 = inlined_call_operand.hbm [shape: f32[2,1,8,128], index: 0, kind: input, shape index: {}]
  %s1 = inlined_call_operand.hbm [shape: f32[2,1,8,128], index: 1, kind: input, shape index: {}]
  %s2 = inlined_call_operand.hbm [shape: f32[2,1,8,128], index: 2, kind: output, shape index: {0}]
  %s3 = inlined_call_operand.hbm [shape: f32[2,1,8,128], index: 3, kind: output, shape index: {1}]
  %4 = xla_tuple %s2, %s3
  %s5 = sld [smem:[#allocation0]]
  $region61: #{tpu_custom_call.1} parent=0
    _
  %s7 = ssub.s32 1, %s5
  %s8 = scalar_select 0, %s7, %s5
  $region1: #{tpu_custom_call.1} parent=0
    #allocation2 [shape = 'u8[8192]{0}', space=vmem, size = 0x2000, scoped, tag = 'input window, operand 0']
    #allocation3 [shape = 's32[2]{0}', space=sflag, size = 0x8, scoped, tag = 'scoped memory for tpu_custom_call.1']
    #allocation4 [shape = 's32[2]{0}', space=sflag, size = 0x8, scoped, tag = 'scoped memory for tpu_custom_call.1']
    #allocation5 [shape = 'u8[8192]{0}', space=vmem, size = 0x2000, scoped, tag = 'input window, operand 1']
    #allocation6 [shape = 's32[2]{0}', space=sflag, size = 0x8, scoped, tag = 'scoped memory for tpu_custom_call.1']
    #allocation7 [shape = 'u8[8192]{0}', space=vmem, size = 0x2000, scoped, tag = 'output window, operand 0']
    #allocation8 [shape = 'u8[8192]{0}', space=vmem, size = 0x2000, scoped, tag = 'output window, operand 1']
    #allocation9 [shape = 's32[2]{0}', space=sflag, size = 0x8, scoped, tag = 'scoped memory for tpu_custom_call.1']
    %9 = vsyncpa [#allocation3], 0
    %s10 = scalar_lea.sflag [#allocation3], 1
    %11 = vsyncpa %s10, 0
    %12 = vsyncpa [#allocation6], 0
    %s13 = scalar_lea.sflag [#allocation6], 1
    %14 = vsyncpa %s13, 0
    %15 = vsyncpa [#allocation4], 0
    %s16 = scalar_lea.sflag [#allocation4], 1
    %17 = vsyncpa %s16, 0
    %18 = vsyncpa [#allocation9], 0
    %s19 = scalar_lea.sflag [#allocation9], 1
    %20 = vsyncpa %s19, 0
    loop: start=0, step=1, limit=4
    $region2: #{tpu_custom_call.1} parent=1 // loop_pre_header
      _
    $region3: #{tpu_custom_call.1} parent=1 // loop_header
      %s22 = sphi 0, %s26
      %p23 = scmp.ge.s32.totalorder %s22, 4
      %s29 = sphi 0, %s48
      %s30 = sphi 0, %s44
      %s31 = sphi 0, %s40
      %s32 = sphi 0, %s29
      %s33 = sphi 0, %s30
      %s34 = sphi 0, %s31
      %s35 = sphi 0, %s32
      %s36 = sphi 0, %s33
      %s37 = sphi 0, %s34
      %s55 = sphi 0, %s57
      %s58 = sphi 0, %s55
      %s59 = sphi 0, %s58
      %s75 = sphi 0, %s59
      %s85 = sphi 0, %s87
      %s88 = sphi 0, %s85
      %s89 = sphi 0, %s88
      %s105 = sphi 0, %s89
      %s113 = sphi 0, %s115
      %s116 = sphi 0, %s113
      %s117 = sphi 0, %s116
      %s133 = sphi 0, %s117
      %s141 = sphi 0, %s143
      %s144 = sphi 0, %s141
      %s145 = sphi 0, %s144
      %s161 = sphi 0, %s145
    $region4: #{tpu_custom_call.1} parent=1 // loop_header_branch
      %25 = sbr.rel (%p23) target = $region8
    $region5: #{tpu_custom_call.1} parent=1 // loop_body
      %s27 = ssub.s32 %s22, 1
      %s28 = ssub.s32 %s22, 2
      %s38 = sadd.s32 1, %s31
      %p39 = scmp.ge.s32.totalorder %s38, 1
      %s40 = scalar_select %p39, 0, %s38
      %s41 = sadd.s32 1, %s30
      %s42 = scalar_select %p39, %s41, %s30
      %p43 = scmp.ge.s32.totalorder %s42, 1
      %s44 = scalar_select %p43, 0, %s42
      %s45 = sadd.s32 1, %s29
      %s46 = scalar_select %p43, %s45, %s29
      %p47 = scmp.ge.s32.totalorder %s46, 2
      %s48 = scalar_select %p47, 0, %s46
      %s49 = sadd.s32 %s30, %s31
      %s50 = sadd.s32 %s44, %s40
      %s51 = ssub.s32 %s29, %s48
      %s52 = ssub.s32 %s49, %s50
      %s53 = sor.u32 %s51, %s52
      %p54 = scmp.eq.s32.totalorder %s53, 0
      %s56 = sadd.s32 %s55, 1
      %s57 = scalar_select %p54, %s55, %s56
      %p60 = pneg %p54
      %p61 = scmp.eq.s32.totalorder %s22, 1
      %p62 = por %p60, %p61
      %p63 = scmp.ne.s32.totalorder %s55, %s58
      %p64 = scmp.eq.s32.totalorder %s22, 0
      %p65 = por %p63, %p64
      %p66 = scmp.ne.s32.totalorder %s55, %s58
      %p67 = scmp.eq.s32.totalorder %s27, 1
      %p68 = por %p66, %p67
      %p69 = scmp.ne.s32.totalorder %s58, %s59
      %p70 = scmp.eq.s32.totalorder %s27, 0
      %p71 = por %p69, %p70
      %p72 = scmp.ne.s32.totalorder %s58, %s59
      %p73 = scmp.eq.s32.totalorder %s28, 1
      %p74 = por %p72, %p73
      %p76 = scmp.ne.s32.totalorder %s59, %s75
      %p77 = scmp.eq.s32.totalorder %s28, 0
      %p78 = por %p76, %p77
      %s79 = sadd.s32 %s30, %s31
      %s80 = sadd.s32 %s44, %s40
      %s81 = ssub.s32 %s29, %s48
      %s82 = ssub.s32 %s79, %s80
      %s83 = sor.u32 %s81, %s82
      %p84 = scmp.eq.s32.totalorder %s83, 0
      %s86 = sadd.s32 %s85, 1
      %s87 = scalar_select %p84, %s85, %s86
      %p90 = pneg %p84
      %p91 = scmp.eq.s32.totalorder %s22, 1
      %p92 = por %p90, %p91
      %p93 = scmp.ne.s32.totalorder %s85, %s88
      %p94 = scmp.eq.s32.totalorder %s22, 0
      %p95 = por %p93, %p94
      %p96 = scmp.ne.s32.totalorder %s85, %s88
      %p97 = scmp.eq.s32.totalorder %s27, 1
      %p98 = por %p96, %p97
      %p99 = scmp.ne.s32.totalorder %s88, %s89
      %p100 = scmp.eq.s32.totalorder %s27, 0
      %p101 = por %p99, %p100
      %p102 = scmp.ne.s32.totalorder %s88, %s89
      %p103 = scmp.eq.s32.totalorder %s28, 1
      %p104 = por %p102, %p103
      %p106 = scmp.ne.s32.totalorder %s89, %s105
      %p107 = scmp.eq.s32.totalorder %s28, 0
      %p108 = por %p106, %p107
      %s109 = ssub.s32 %s29, %s48
      %s110 = ssub.s32 %s30, %s44
      %s111 = sor.u32 %s109, %s110
      %p112 = scmp.eq.s32.totalorder %s111, 0
      %s114 = sadd.s32 %s113, 1
      %s115 = scalar_select %p112, %s113, %s114
      %p118 = pneg %p112
      %p119 = scmp.eq.s32.totalorder %s22, 1
      %p120 = por %p118, %p119
      %p121 = scmp.ne.s32.totalorder %s113, %s116
      %p122 = scmp.eq.s32.totalorder %s22, 0
      %p123 = por %p121, %p122
      %p124 = scmp.ne.s32.totalorder %s113, %s116
      %p125 = scmp.eq.s32.totalorder %s27, 1
      %p126 = por %p124, %p125
      %p127 = scmp.ne.s32.totalorder %s116, %s117
      %p128 = scmp.eq.s32.totalorder %s27, 0
      %p129 = por %p127, %p128
      %p130 = scmp.ne.s32.totalorder %s116, %s117
      %p131 = scmp.eq.s32.totalorder %s28, 1
      %p132 = por %p130, %p131
      %p134 = scmp.ne.s32.totalorder %s117, %s133
      %p135 = scmp.eq.s32.totalorder %s28, 0
      %p136 = por %p134, %p135
      %s137 = ssub.s32 %s29, %s48
      %s138 = ssub.s32 %s30, %s44
      %s139 = sor.u32 %s137, %s138
      %p140 = scmp.eq.s32.totalorder %s139, 0
      %s142 = sadd.s32 %s141, 1
      %s143 = scalar_select %p140, %s141, %s142
      %p146 = pneg %p140
      %p147 = scmp.eq.s32.totalorder %s22, 1
      %p148 = por %p146, %p147
      %p149 = scmp.ne.s32.totalorder %s141, %s144
      %p150 = scmp.eq.s32.totalorder %s22, 0
      %p151 = por %p149, %p150
      %p152 = scmp.ne.s32.totalorder %s141, %s144
      %p153 = scmp.eq.s32.totalorder %s27, 1
      %p154 = por %p152, %p153
      %p155 = scmp.ne.s32.totalorder %s144, %s145
      %p156 = scmp.eq.s32.totalorder %s27, 0
      %p157 = por %p155, %p156
      %p158 = scmp.ne.s32.totalorder %s144, %s145
      %p159 = scmp.eq.s32.totalorder %s28, 1
      %p160 = por %p158, %p159
      %p162 = scmp.ne.s32.totalorder %s145, %s161
      %p163 = scmp.eq.s32.totalorder %s28, 0
      %p164 = por %p162, %p163
      %p165 = scmp.le.s32.totalorder 1, %s22
      %p166 = scmp.lt.s32.totalorder %s22, 3
      %p167 = pnand %p165, %p166
      %p168 = pneg %p167
      // Predicated region
      $region9: #{tpu_custom_call.1} parent=5 // pred_check
        _
      $region10: #{tpu_custom_call.1} parent=5 // pred_check_branch
        %170 = sbr.rel (%p167) target = $region12
      $region11: #{tpu_custom_call.1} parent=5 // pred_region
        %s171 = ssub.s32 %s22, 1
      $region12: #{tpu_custom_call.1} parent=5 // pred_fallthru
        _
      %p172 = scmp.lt.s32.totalorder %s22, 2
      // Predicated region
      $region13: #{tpu_custom_call.1} parent=5 // pred_check
        %p173 = pneg %p172
      $region14: #{tpu_custom_call.1} parent=5 // pred_check_branch
        %175 = sbr.rel (%p173) target = $region16
      $region15: #{tpu_custom_call.1} parent=5 // pred_region
        // Predicated region
        $region17: #{tpu_custom_call.1} parent=15 // pred_check
          %p176 = pneg %p65
        $region18: #{tpu_custom_call.1} parent=15 // pred_check_branch
          %178 = sbr.rel (%p176) target = $region20
        $region19: #{tpu_custom_call.1} parent=15 // pred_region
          %s179 = sand.u32 %s55, 1
          %s180 = scalar_lea.sflag [#allocation3], %s179
          %s181 = sand.u32 %s55, 1
          %s182 = smul.addr %s181, 8
          %s183 = scalar_lea.vmem [#allocation2], %s182
          %s184 = sadd.s32 %s30, %s31
          %s186 = ssub.s32 128, 128
          %187 = vsyncadd %s180, %s186
          %s188 = sadd.s32 %s184, %s29
          %s189 = smul.addr %s188, 128
          %s190 = scalar_lea.hbm %s0, %s189
          %s192 = sshll.u32 %s183, 4
          %s193 = int_to_ptr.vmem [resolvable:$true] %s192
          %195 = dma.hbm_to_vmem [thread:$0]  %s190, 128, %s193, %s180
        $region20: #{tpu_custom_call.1} parent=15 // pred_fallthru
          _
        // Predicated region
        $region21: #{tpu_custom_call.1} parent=15 // pred_check
          %p196 = pneg %p95
        $region22: #{tpu_custom_call.1} parent=15 // pred_check_branch
          %198 = sbr.rel (%p196) target = $region24
        $region23: #{tpu_custom_call.1} parent=15 // pred_region
          %s199 = sand.u32 %s85, 1
          %s200 = scalar_lea.sflag [#allocation6], %s199
          %s201 = sand.u32 %s85, 1
          %s202 = smul.addr %s201, 8
          %s203 = scalar_lea.vmem [#allocation5], %s202
          %s204 = sadd.s32 %s30, %s31
          %s206 = ssub.s32 128, 128
          %207 = vsyncadd %s200, %s206
          %s208 = sadd.s32 %s204, %s29
          %s209 = smul.addr %s208, 128
          %s210 = scalar_lea.hbm %s1, %s209
          %s212 = sshll.u32 %s203, 4
          %s213 = int_to_ptr.vmem [resolvable:$true] %s212
          %215 = dma.hbm_to_vmem [thread:$0]  %s210, 128, %s213, %s200
        $region24: #{tpu_custom_call.1} parent=15 // pred_fallthru
          _
      $region16: #{tpu_custom_call.1} parent=5 // pred_fallthru
        _
      %p216 = scmp.le.s32.totalorder 1, %s22
      %p217 = scmp.lt.s32.totalorder %s22, 3
      %p218 = pnand %p216, %p217
      %p219 = pneg %p218
      // Predicated region
      $region25: #{tpu_custom_call.1} parent=5 // pred_check
        _
      $region26: #{tpu_custom_call.1} parent=5 // pred_check_branch
        %221 = sbr.rel (%p218) target = $region28
      $region27: #{tpu_custom_call.1} parent=5 // pred_region
        %s222 = ssub.s32 %s22, 1
        %s223 = sand.u32 %s58, 1
        %s224 = scalar_lea.sflag [#allocation3], %s223
        %s225 = sand.u32 %s58, 1
        %s226 = smul.addr %s225, 8
        %s227 = scalar_lea.vmem [#allocation2], %s226
        // Predicated region
        $region29: #{tpu_custom_call.1} parent=27 // pred_check
          %p228 = pneg %p71
        $region30: #{tpu_custom_call.1} parent=27 // pred_check_branch
          %230 = sbr.rel (%p228) target = $region32
        $region31: #{tpu_custom_call.1} parent=27 // pred_region
          %231 = dma.done %s224, 128
        $region32: #{tpu_custom_call.1} parent=27 // pred_fallthru
          _
        %s232 = sand.u32 %s88, 1
        %s233 = scalar_lea.sflag [#allocation6], %s232
        %s234 = sand.u32 %s88, 1
        %s235 = smul.addr %s234, 8
        %s236 = scalar_lea.vmem [#allocation5], %s235
        // Predicated region
        $region33: #{tpu_custom_call.1} parent=27 // pred_check
          %p237 = pneg %p101
        $region34: #{tpu_custom_call.1} parent=27 // pred_check_branch
          %239 = sbr.rel (%p237) target = $region36
        $region35: #{tpu_custom_call.1} parent=27 // pred_region
          %240 = dma.done %s233, 128
        $region36: #{tpu_custom_call.1} parent=27 // pred_fallthru
          _
        %s241 = sand.u32 %s58, 1
        %s242 = scalar_lea.sflag [#allocation3], %s241
        %s243 = sand.u32 %s58, 1
        %s244 = smul.addr %s243, 8
        %s245 = scalar_lea.vmem [#allocation2], %s244
        %p246 = pneg %p71
        %p247 = pneg %p68
        %s248 = sand.u32 %s88, 1
        %s249 = scalar_lea.sflag [#allocation6], %s248
        %s250 = sand.u32 %s88, 1
        %s251 = smul.addr %s250, 8
        %s252 = scalar_lea.vmem [#allocation5], %s251
        %p253 = pneg %p101
        %p254 = pneg %p98
        %p255 = pneg %p129
        %p256 = pneg %p126
        %s257 = sand.u32 %s116, 1
        %s258 = scalar_lea.sflag [#allocation4], %s257
        %s259 = sand.u32 %s116, 1
        %s260 = smul.addr %s259, 8
        %s261 = scalar_lea.vmem [#allocation7], %s260
        %p262 = pneg %p157
        %p263 = pneg %p154
        %s264 = sand.u32 %s144, 1
        %s265 = scalar_lea.sflag [#allocation9], %s264
        %s266 = sand.u32 %s144, 1
        %s267 = smul.addr %s266, 8
        %s268 = scalar_lea.vmem [#allocation8], %s267
        %s269 = sadd.s32 %s33, %s34
        %s270 = sadd.s32 %s33, %s34
        %p271 = scmp.eq.s32.totalorder %s34, 0
        // Predicated region
        $region37: #{tpu_custom_call.1} parent=27 // pred_check
          %p272 = pneg %p271
        $region38: #{tpu_custom_call.1} parent=27 // pred_check_branch
          %274 = sbr.rel (%p272) target = $region40
        $region39: #{tpu_custom_call.1} parent=27 // pred_region
          %275 = vst [vmem:[%s261] sm:$0xff] 0.0
          %276 = vst [vmem:[%s268] sm:$0xff] 0.0
        $region40: #{tpu_custom_call.1} parent=27 // pred_fallthru
          _
        %v277 = vld [vmem:[%s227] sm:$0xff]
        %v278 = vld [vmem:[%s236] sm:$0xff]
        %v279 = vmin.f32 %v277, 192.0
        %v280 = vmax.f32 %v278, 0.0
        %v281 = vmin.f32 %v280, 192.0
        %vm282 = vcmp.gt.f32.partialorder %v279, 0.0001
        %v283 = vsel %vm282, 1, 0
        %v284 = vcvt.s32.f32 %v283
        %v285 = vsub.f32 %v281, %v279
        %v286 = vand.u32 2147483647, %v285
        %v287 = vmul.f32 %v286, %v284
        %v288 = vadd.f32 %v287, 0.0
        %v289 = vadd.f32 %v284, 0.0
        %v290 = vld [vmem:[%s261] sm:$0xff]
        %v291 = vadd.f32 %v290, %v288
        %292 = vst [vmem:[%s261] sm:$0xff] %v291
        %v293 = vld [vmem:[%s268] sm:$0xff]
        %v294 = vadd.f32 %v293, %v289
        %295 = vst [vmem:[%s268] sm:$0xff] %v294
        %s296 = sand.u32 %s116, 1
        %s297 = scalar_lea.sflag [#allocation4], %s296
        %s298 = sand.u32 %s116, 1
        %s299 = smul.addr %s298, 8
        %s300 = scalar_lea.vmem [#allocation7], %s299
        %s301 = sand.u32 %s144, 1
        %s302 = scalar_lea.sflag [#allocation9], %s301
        %s303 = sand.u32 %s144, 1
        %s304 = smul.addr %s303, 8
        %s305 = scalar_lea.vmem [#allocation8], %s304
        // Predicated region
        $region41: #{tpu_custom_call.1} parent=27 // pred_check
          %p306 = pneg %p126
        $region42: #{tpu_custom_call.1} parent=27 // pred_check_branch
          %308 = sbr.rel (%p306) target = $region44
        $region43: #{tpu_custom_call.1} parent=27 // pred_region
          %s310 = ssub.s32 128, 128
          %311 = vsyncadd %s297, %s310
          %s312 = sadd.s32 %s33, %s32
          %s313 = smul.addr %s312, 128
          %s314 = scalar_lea.hbm %s2, %s313
          %s316 = sshll.u32 %s300, 4
          %s317 = int_to_ptr.vmem [resolvable:$true] %s316
          %319 = dma.vmem_to_hbm [thread:$0]  %s317, 128, %s314, %s297
        $region44: #{tpu_custom_call.1} parent=27 // pred_fallthru
          _
        // Predicated region
        $region45: #{tpu_custom_call.1} parent=27 // pred_check
          %p320 = pneg %p154
        $region46: #{tpu_custom_call.1} parent=27 // pred_check_branch
          %322 = sbr.rel (%p320) target = $region48
        $region47: #{tpu_custom_call.1} parent=27 // pred_region
          %s324 = ssub.s32 128, 128
          %325 = vsyncadd %s302, %s324
          %s326 = sadd.s32 %s33, %s32
          %s327 = smul.addr %s326, 128
          %s328 = scalar_lea.hbm %s3, %s327
          %s330 = sshll.u32 %s305, 4
          %s331 = int_to_ptr.vmem [resolvable:$true] %s330
          %333 = dma.vmem_to_hbm [thread:$0]  %s331, 128, %s328, %s302
        $region48: #{tpu_custom_call.1} parent=27 // pred_fallthru
          _
      $region28: #{tpu_custom_call.1} parent=5 // pred_fallthru
        _
      %p334 = scmp.le.s32.totalorder 2, %s22
      // Predicated region
      $region49: #{tpu_custom_call.1} parent=5 // pred_check
        %p335 = pneg %p334
      $region50: #{tpu_custom_call.1} parent=5 // pred_check_branch
        %337 = sbr.rel (%p335) target = $region52
      $region51: #{tpu_custom_call.1} parent=5 // pred_region
        %s338 = ssub.s32 %s22, 2
        // Predicated region
        $region53: #{tpu_custom_call.1} parent=51 // pred_check
          %p339 = pneg %p132
        $region54: #{tpu_custom_call.1} parent=51 // pred_check_branch
          %341 = sbr.rel (%p339) target = $region56
        $region55: #{tpu_custom_call.1} parent=51 // pred_region
          %s342 = sand.u32 %s117, 1
          %s343 = scalar_lea.sflag [#allocation4], %s342
          %s344 = sand.u32 %s117, 1
          %s345 = smul.addr %s344, 8
          %s346 = scalar_lea.vmem [#allocation7], %s345
          %347 = dma.done %s343, 128
        $region56: #{tpu_custom_call.1} parent=51 // pred_fallthru
          _
        // Predicated region
        $region57: #{tpu_custom_call.1} parent=51 // pred_check
          %p348 = pneg %p160
        $region58: #{tpu_custom_call.1} parent=51 // pred_check_branch
          %350 = sbr.rel (%p348) target = $region60
        $region59: #{tpu_custom_call.1} parent=51 // pred_region
          %s351 = sand.u32 %s145, 1
          %s352 = scalar_lea.sflag [#allocation9], %s351
          %s353 = sand.u32 %s145, 1
          %s354 = smul.addr %s353, 8
          %s355 = scalar_lea.vmem [#allocation8], %s354
          %356 = dma.done %s352, 128
        $region60: #{tpu_custom_call.1} parent=51 // pred_fallthru
          _
      $region52: #{tpu_custom_call.1} parent=5 // pred_fallthru
        _
    $region6: #{tpu_custom_call.1} parent=1 // loop_footer
      %s26 = sadd.s32 1, %s22
    $region7: #{tpu_custom_call.1} parent=1 // loop_footer_branch
      %21 = sbr.rel target = $region3
    $region8: #{tpu_custom_call.1} parent=1 // loop_exit
      _
    %357 = vsyncpa [#allocation3], 1
    %s358 = scalar_lea.sflag [#allocation3], 1
    %359 = vsyncpa %s358, 1
    %360 = vsyncpa [#allocation6], 1
    %s361 = scalar_lea.sflag [#allocation6], 1
    %362 = vsyncpa %s361, 1
    %363 = vsyncpa [#allocation4], 1
    %s364 = scalar_lea.sflag [#allocation4], 1
    %365 = vsyncpa %s364, 1
    %366 = vsyncpa [#allocation9], 1
    %s367 = scalar_lea.sflag [#allocation9], 1
    %368 = vsyncpa %s367, 1

</llo_original>
